<compile_context>
chip_gen: v5e
topology: v5e:2x2
jax: 0.10.0
libtpu: 0.0.40
codegen_flags: <defaults>
</compile_context>

<pallas_src>
import numpy as np
import jax
import jax.numpy as jnp
from jax.experimental import pallas as pl
from jax.experimental.pallas import tpu as pltpu

# ----- module hyper-parameters (consistent with __init__) ---------------------
UV_DIM = 3          # uv_dim
NUM_FREQS = 2       # num_freqs
VIEW_FREQS = 2      # view_freqs
LAYERS = (1, 1)     # layers
WIDTH = 32          # width
CHANNELS = 3        # out_channels
CLAMP = True        # clamp (True -> sigmoid heads)
LEAKY_SLOPE = 0.2   # nn.LeakyReLU(0.2)

IN1 = UV_DIM + 2 * UV_DIM * NUM_FREQS           # block1 input width (15)
IN2 = WIDTH + 3 + 2 * 3 * VIEW_FREQS            # block2 input width (47)

A1_ROWS = IN1 + 1                               # 16: [uv | PE(uv) | ones]
A2_ROWS = IN2 + 1                               # 48: [h | vd | PE(vd) | ones]
BIAS_COL = A2_ROWS                              # explicit-bias column (48)
BLOB_W = A2_ROWS + 1                            # packed blob width (49)
GROUP_ALIGN = 16                                # bf16 sublane tile alignment


def _round_up(x, m):
    return ((x + m - 1) // m) * m


# ----- shared math (used by the pure-JAX reference) ----------------------------
def _leaky_relu(x, slope=LEAKY_SLOPE):
    return jnp.where(x >= 0, x, slope * x)


def _pos_enc(x, num_freqs):
    """NeuTex-style positional encoding (dim-major / freq-minor, [sin, cos])."""
    if num_freqs <= 0:
        return jnp.zeros(x.shape[:-1] + (0,), dtype=x.dtype)
    d = x.shape[-1]
    cols = []
    for di in range(d):
        for f in range(num_freqs):
            cols.append(x[..., di:di + 1] * jnp.float32(2.0 ** f))
    pts = jnp.concatenate(cols, axis=-1)
    return jnp.concatenate([jnp.sin(pts), jnp.cos(pts)], axis=-1)


# ----- parameter packing -------------------------------------------------------
# Input `params` (same order as init_params / the torch module):
#   block1:  W (IN1,W), b ; LAYERS[0] x [W (W,W), b]
#   color1:  W (W,C),  b
#   block2:  W (IN2,W), b ; LAYERS[1] x [W (W,W), b] ; W (W,C), b
# Output: one bf16 blob (rows, 49).  Each group is a transposed weight
# sub-matrix (out, in) in the KERNEL's activation-row order (PE columns
# permuted, layer-0 bias folded into the ones-row column), rows padded to
# 16-multiples, explicit bias (hidden/head layers) in column 48.
def _pack_params(params, weight_dtype=jnp.bfloat16):
    params = [np.asarray(p, np.float32) for p in params]
    idx = [0]

    def take():
        w, b = params[idx[0]], params[idx[0] + 1]
        idx[0] += 2
        return w, b.reshape(-1)

    groups = {}      # name -> (row_offset, out_rows, in_cols, has_bias_col)
    blocks = []
    off = [0]

    def add(name, w_oi, bias_col=None):
        out_f, in_f = w_oi.shape
        pad = _round_up(out_f, GROUP_ALIGN)
        blk = np.zeros((pad, BLOB_W), np.float32)
        blk[:out_f, :in_f] = w_oi
        if bias_col is not None:
            blk[:out_f, BIAS_COL] = bias_col
        groups[name] = (off[0], out_f, in_f, bias_col is not None)
        blocks.append(blk)
        off[0] += pad

    # --- block1 layer 0: permute PE columns to kernel row order, fold bias ---
    w, b = take()                                      # (IN1, WIDTH)
    perm1 = list(range(UV_DIM))
    for f in range(NUM_FREQS):
        perm1 += [UV_DIM + d * NUM_FREQS + f for d in range(UV_DIM)]            # sin
        perm1 += [UV_DIM + UV_DIM * NUM_FREQS + d * NUM_FREQS + f
                  for d in range(UV_DIM)]                                       # cos
    w1 = np.zeros((WIDTH, A1_ROWS), np.float32)
    w1[:, :IN1] = w.T[:, perm1]
    w1[:, A1_ROWS - 1] = b                             # bias folded into ones row
    add("L1", w1)

    # --- block1 hidden layers ---
    for l in range(LAYERS[0]):
        w, b = take()
        add(f"B1H{l}", w.T, bias_col=b)

    # --- color1 head (fused below into L2STK) ---
    wc1, bc1 = take()                                  # (WIDTH, CHANNELS)

    # --- block2 layer 0 (permuted + bias folded) fused with color1 ---
    w, b = take()                                      # (IN2, WIDTH)
    perm2 = list(range(WIDTH)) + [WIDTH + d for d in range(3)]
    for f in range(VIEW_FREQS):
        perm2 += [WIDTH + 3 + d * VIEW_FREQS + f for d in range(3)]             # sin
        perm2 += [WIDTH + 3 + 3 * VIEW_FREQS + d * VIEW_FREQS + f
                  for d in range(3)]                                            # cos
    w2 = np.zeros((WIDTH, A2_ROWS), np.float32)
    w2[:, :IN2] = w.T[:, perm2]
    w2[:, A2_ROWS - 1] = b
    c1w = np.zeros((CHANNELS, A2_ROWS), np.float32)
    c1w[:, :WIDTH] = wc1.T                             # color1 consumes rows 0:W (=h)
    c1w[:, A2_ROWS - 1] = bc1
    add("L2STK", np.concatenate([w2, c1w], axis=0))    # rows 0:W -> block2 l0, W:W+C -> color1

    # --- block2 hidden layers + final head ---
    for l in range(LAYERS[1]):
        w, b = take()
        add(f"B2H{l}", w.T, bias_col=b)
    w, b = take()
    add("C2", w.T, bias_col=b)

    blob = jnp.asarray(np.concatenate(blocks, axis=0)).astype(weight_dtype)
    return blob, groups


# ----- Pallas kernel (lane-dense, fused layer-0 matmuls, bf16 MXU) -------------
def _make_kernel(groups, compute_dtype=jnp.bfloat16):
    def leaky(x):
        return jnp.where(x >= 0, x, jnp.float32(LEAKY_SLOPE) * x)

    def head1(x):
        return jax.nn.sigmoid(x) if CLAMP else jax.nn.softplus(x)

    def head2(x):
        return jax.nn.sigmoid(x) if CLAMP else x

    def kernel(xin_ref, p_ref, out_ref, a1_ref, a2_ref):
        # xin: (8, bm) f32 -- rows 0-2 uv, 3-5 view_dir, 6-7 zero (lane-dense)
        x = xin_ref[...].astype(jnp.float32)
        bm = x.shape[1]

        # ---- assemble BOTH layer-0 activations into f32 VMEM scratch --------
        a1_ref[0:UV_DIM, :] = x[0:UV_DIM, :]                       # uv
        a2_ref[WIDTH:WIDTH + 3, :] = x[UV_DIM:UV_DIM + 3, :]       # view_dir
        r1, r2 = UV_DIM, WIDTH + 3
        for f in range(max(NUM_FREQS, VIEW_FREQS)):
            s = x * jnp.float32(2.0 ** f)          # one scale / sin / cos per freq,
            sn, cs = jnp.sin(s), jnp.cos(s)        # full 8-sublane vregs, both blocks
            if f < NUM_FREQS:
                a1_ref[r1:r1 + UV_DIM, :] = sn[0:UV_DIM, :]
                a1_ref[r1 + UV_DIM:r1 + 2 * UV_DIM, :] = cs[0:UV_DIM, :]
                r1 += 2 * UV_DIM
            if f < VIEW_FREQS:
                a2_ref[r2:r2 + 3, :] = sn[UV_DIM:UV_DIM + 3, :]
                a2_ref[r2 + 3:r2 + 6, :] = cs[UV_DIM:UV_DIM + 3, :]
                r2 += 6
        ones = jnp.ones((1, bm), jnp.float32)
        # bias/ones rows are rewritten every step (scratch is per-core and the
        # grid axis is "parallel": never rely on step==0 initialization).
        a1_ref[A1_ROWS - 1:A1_ROWS, :] = ones
        a2_ref[A2_ROWS - 1:A2_ROWS, :] = ones

        def mm(name, a):
            r, o, i, has_b = groups[name]                  # static python ints
            w = p_ref[r:r + o, 0:i]                        # bf16 weights
            y = jnp.dot(w, a.astype(compute_dtype),
                        preferred_element_type=jnp.float32)
            if has_b:
                y = y + p_ref[r:r + o, BIAS_COL:BIAS_COL + 1].astype(jnp.float32)
            return y

        # block1: one fused K=16 matmul (bias folded), then hidden layers
        h = leaky(mm("L1", a1_ref[...]))
        for l in range(LAYERS[0]):
            h = leaky(mm(f"B1H{l}", h))

        # block2 layer-0 + color1 head fused: one K=48 matmul -> (W+C, bm)
        a2_ref[0:WIDTH, :] = h
        z = mm("L2STK", a2_ref[...])
        c1 = head1(z[WIDTH:WIDTH + CHANNELS, :])           # color1 (sigmoid/softplus)
        g = leaky(z[0:WIDTH, :])                           # block2 layer-0
        for l in range(LAYERS[1]):
            g = leaky(mm(f"B2H{l}", g))
        c2 = head2(mm("C2", g))

        out_ref[...] = jnp.maximum(c1 + c2, jnp.float32(0.0)).astype(out_ref.dtype)

    return kernel


# ----- decoder factory / wrapper -----------------------------------------------
def make_texture_mlp_decoder(params, *, block_m=4096, compute_dtype=jnp.bfloat16):
    """Returns a jitted apply(uv, view_dir) for fixed parameters.

    block_m: rows per grid step (multiple of 128; sweep 2048-8192 on real
             workloads).  compute_dtype=jnp.float32 disables the bf16 MXU path.
    """
    assert block_m >= 128 and block_m % 128 == 0
    blob, groups = _pack_params(params, weight_dtype=compute_dtype)
    kernel = _make_kernel(groups, compute_dtype=compute_dtype)

    @jax.jit
    def apply(uv, view_dir):
        lead = uv.shape[:-1]
        M = int(np.prod(lead))
        m128 = _round_up(max(M, 1), 128)
        bm = min(block_m, m128)
        # v7x megacore: keep >= 2 grid steps whenever M >= 256 so the
        # "parallel" axis can shard across both TensorCores (harmless on
        # single-TC v5e/v6e).
        if m128 >= 256:
            bm = min(bm, max(128, (m128 // 2) // 128 * 128))
        Mp = _round_up(m128, bm)

        vd = jnp.broadcast_to(view_dir, lead + (view_dir.shape[-1],))
        # single lane-dense (8, M) input: rows 0-2 uv, 3-5 view_dir, 6-7 zero.
        # reshape/transpose/pad are fused by XLA under jit.
        packed = jnp.concatenate(
            [uv.reshape(M, UV_DIM).astype(jnp.float32).T,
             vd.reshape(M, 3).astype(jnp.float32).T,
             jnp.zeros((2, M), jnp.float32)], axis=0)
        if Mp != M:
            packed = jnp.pad(packed, ((0, 0), (0, Mp - M)))

        out = pl.pallas_call(
            kernel,
            out_shape=jax.ShapeDtypeStruct((CHANNELS, Mp), jnp.float32),
            grid=(Mp // bm,),
            in_specs=[
                pl.BlockSpec((8, bm), lambda i: (0, i)),
                # whole packed bf16 weight blob resident in VMEM every step
                # (constant index_map -> fetched once, not re-DMA'd per step)
                pl.BlockSpec(blob.shape, lambda i: (0, 0)),
            ],
            out_specs=pl.BlockSpec((CHANNELS, bm), lambda i: (0, i)),
            scratch_shapes=[
                pltpu.VMEM((A1_ROWS, bm), jnp.float32),   # block1 layer-0 input
                pltpu.VMEM((A2_ROWS, bm), jnp.float32),   # block2 layer-0 input
            ],
            # VMEM at bm=4096 is a few MiB << 32 MiB default scoped limit on all
            # generations; only set vmem_limit_bytes if block_m is pushed >8192.
            compiler_params=pltpu.CompilerParams(
                dimension_semantics=("parallel",)),
        )(packed, blob)

        return out[:, :M].T.reshape(lead + (CHANNELS,))

    return apply


# ----- deterministic parameter init (torch nn.Linear-style) --------------------
def _linear(key, fan_in, fan_out):
    k1, k2 = jax.random.split(key)
    s = 1.0 / np.sqrt(fan_in)
    w = jax.random.uniform(k1, (fan_in, fan_out), jnp.float32, -s, s)
    b = jax.random.uniform(k2, (1, fan_out), jnp.float32, -s, s)
    return w, b


def init_params(key):
    params = []
    dims1 = [IN1] + [WIDTH] * (1 + LAYERS[0])
    for i in range(len(dims1) - 1):
        key, sub = jax.random.split(key)
        params.extend(_linear(sub, dims1[i], dims1[i + 1]))
    key, sub = jax.random.split(key)
    params.extend(_linear(sub, WIDTH, CHANNELS))                 # color1
    dims2 = [IN2] + [WIDTH] * (1 + LAYERS[1]) + [CHANNELS]
    for i in range(len(dims2) - 1):
        key, sub = jax.random.split(key)
        params.extend(_linear(sub, dims2[i], dims2[i + 1]))
    return params


# ----- pure-JAX reference (row-major f32, same math, no Pallas) -----------------
def reference(uv, view_dir, params):
    lead = uv.shape[:-1]
    vd = jnp.broadcast_to(view_dir, lead + (view_dir.shape[-1],))
    idx = [0]

    def take():
        w, b = params[idx[0]], params[idx[0] + 1]
        idx[0] += 2
        return w, b

    x = jnp.concatenate([uv, _pos_enc(uv, NUM_FREQS)], axis=-1)
    for _ in range(1 + LAYERS[0]):
        w, b = take()
        x = _leaky_relu(x @ w + b)
    wc, bc = take()
    c1 = jax.nn.sigmoid(x @ wc + bc) if CLAMP else jax.nn.softplus(x @ wc + bc)
    y = jnp.concatenate([x, vd, _pos_enc(vd, VIEW_FREQS)], axis=-1)
    for _ in range(1 + LAYERS[1]):
        w, b = take()
        y = _leaky_relu(y @ w + b)
    w, b = take()
    c2 = y @ w + b
    c2 = jax.nn.sigmoid(c2) if CLAMP else c2
    return jnp.maximum(c1 + c2, 0.0)


if __name__ == "__main__":
    key = jax.random.PRNGKey(0)
    kp, ku, kv = jax.random.split(key, 3)
    params = init_params(kp)
    decoder = make_texture_mlp_decoder(params)

    # bf16 matmul operands -> looser tolerance than a pure-f32 kernel.
    RTOL = ATOL = 3e-2

    # single-tile path (M=64 -> bm=128, 1 grid step)
    N, R, S = 2, 4, 8
    uv = jax.random.normal(ku, (N, R, S, UV_DIM), jnp.float32)
    vd = jax.random.normal(kv, (N, R, S, 3), jnp.float32)
    vd = vd / jnp.linalg.norm(vd, axis=-1, keepdims=True)
    out = jax.block_until_ready(decoder(uv, vd))
    ref = jax.block_until_ready(reference(uv, vd, params))
    assert out.shape == (N, R, S, CHANNELS)
    np.testing.assert_allclose(np.asarray(out), np.asarray(ref), rtol=RTOL, atol=ATOL)

    # multi-tile + ragged-tail path (M=160 -> 2 steps of 128, padded rows dropped)
    uv2 = jax.random.normal(ku, (2, 8, 10, UV_DIM), jnp.float32)
    vd2 = jax.random.normal(kv, (2, 8, 10, 3), jnp.float32)
    vd2 = vd2 / jnp.linalg.norm(vd2, axis=-1, keepdims=True)
    out2 = jax.block_until_ready(decoder(uv2, vd2))
    ref2 = jax.block_until_ready(reference(uv2, vd2, params))
    np.testing.assert_allclose(np.asarray(out2), np.asarray(ref2), rtol=RTOL, atol=ATOL)

    print("KERNEL_OK")
</pallas_src>

<mosaic_0001>
module attributes {stable_mosaic.version = 11 : i64} {
  func.func @kernel(%arg0: i32, %arg1: memref<8x128xf32, #tpu.memory_space<vmem>>, %arg2: memref<160x49xbf16, #tpu.memory_space<vmem>>, %arg3: memref<3x128xf32, #tpu.memory_space<vmem>>, %arg4: memref<16x128xf32, #tpu.memory_space<vmem>>, %arg5: memref<48x128xf32, #tpu.memory_space<vmem>>) attributes {dimension_semantics = [#tpu.dimension_semantics<parallel>], iteration_bounds = array<i64: 1>, scalar_prefetch = 0 : i64, scratch_operands = 2 : i64, tpu.core_type = #tpu.core_type<tc>, window_params = [{transform_indices = @transform_0, window_bounds = array<i64: 8, 128>}, {pipeline_mode = #tpu.pipeline_mode<synchronous>, transform_indices = @transform_1, window_bounds = array<i64: 160, 49>}, {transform_indices = @transform_2, window_bounds = array<i64: 3, 128>}]} {
    %c0 = arith.constant 0 : index
    %c0_0 = arith.constant 0 : index
    %0 = vector.load %arg1[%c0, %c0_0] : memref<8x128xf32, #tpu.memory_space<vmem>>, vector<8x128xf32>
    %1 = vector.extract_strided_slice %0 {offsets = [0, 0], sizes = [3, 128], strides = [1, 1]} : vector<8x128xf32> to vector<3x128xf32>
    %c0_1 = arith.constant 0 : index
    %c0_2 = arith.constant 0 : index
    %2 = vector.load %arg4[%c0_1, %c0_2] : memref<16x128xf32, #tpu.memory_space<vmem>>, vector<3x128xf32>
    tpu.vector_store %arg4[%c0_1, %c0_2], %1 {strides = array<i32>} : memref<16x128xf32, #tpu.memory_space<vmem>>, vector<3x128xf32>,
    %3 = vector.extract_strided_slice %0 {offsets = [3, 0], sizes = [3, 128], strides = [1, 1]} : vector<8x128xf32> to vector<3x128xf32>
    %c32 = arith.constant 32 : index
    %c0_3 = arith.constant 0 : index
    %4 = vector.load %arg5[%c32, %c0_3] : memref<48x128xf32, #tpu.memory_space<vmem>>, vector<3x128xf32>
    tpu.vector_store %arg5[%c32, %c0_3], %3 {strides = array<i32>} : memref<48x128xf32, #tpu.memory_space<vmem>>, vector<3x128xf32>,
    %cst = arith.constant 1.000000e+00 : f32
    %5 = vector.broadcast %cst : f32 to vector<8x128xf32>
    %6 = arith.mulf %0, %5 : vector<8x128xf32>
    %7 = math.sin %6 : vector<8x128xf32>
    %8 = math.cos %6 : vector<8x128xf32>
    %9 = vector.extract_strided_slice %7 {offsets = [0, 0], sizes = [3, 128], strides = [1, 1]} : vector<8x128xf32> to vector<3x128xf32>
    %c3 = arith.constant 3 : index
    %c0_4 = arith.constant 0 : index
    %10 = vector.load %arg4[%c3, %c0_4] : memref<16x128xf32, #tpu.memory_space<vmem>>, vector<3x128xf32>
    tpu.vector_store %arg4[%c3, %c0_4], %9 {strides = array<i32>} : memref<16x128xf32, #tpu.memory_space<vmem>>, vector<3x128xf32>,
    %11 = vector.extract_strided_slice %8 {offsets = [0, 0], sizes = [3, 128], strides = [1, 1]} : vector<8x128xf32> to vector<3x128xf32>
    %c6 = arith.constant 6 : index
    %c0_5 = arith.constant 0 : index
    %12 = vector.load %arg4[%c6, %c0_5] : memref<16x128xf32, #tpu.memory_space<vmem>>, vector<3x128xf32>
    tpu.vector_store %arg4[%c6, %c0_5], %11 {strides = array<i32>} : memref<16x128xf32, #tpu.memory_space<vmem>>, vector<3x128xf32>,
    %13 = vector.extract_strided_slice %7 {offsets = [3, 0], sizes = [3, 128], strides = [1, 1]} : vector<8x128xf32> to vector<3x128xf32>
    %c35 = arith.constant 35 : index
    %c0_6 = arith.constant 0 : index
    %14 = vector.load %arg5[%c35, %c0_6] : memref<48x128xf32, #tpu.memory_space<vmem>>, vector<3x128xf32>
    tpu.vector_store %arg5[%c35, %c0_6], %13 {strides = array<i32>} : memref<48x128xf32, #tpu.memory_space<vmem>>, vector<3x128xf32>,
    %15 = vector.extract_strided_slice %8 {offsets = [3, 0], sizes = [3, 128], strides = [1, 1]} : vector<8x128xf32> to vector<3x128xf32>
    %c38 = arith.constant 38 : index
    %c0_7 = arith.constant 0 : index
    %16 = vector.load %arg5[%c38, %c0_7] : memref<48x128xf32, #tpu.memory_space<vmem>>, vector<3x128xf32>
    tpu.vector_store %arg5[%c38, %c0_7], %15 {strides = array<i32>} : memref<48x128xf32, #tpu.memory_space<vmem>>, vector<3x128xf32>,
    %cst_8 = arith.constant 2.000000e+00 : f32
    %17 = vector.broadcast %cst_8 : f32 to vector<8x128xf32>
    %18 = arith.mulf %0, %17 : vector<8x128xf32>
    %19 = math.sin %18 : vector<8x128xf32>
    %20 = math.cos %18 : vector<8x128xf32>
    %21 = vector.extract_strided_slice %19 {offsets = [0, 0], sizes = [3, 128], strides = [1, 1]} : vector<8x128xf32> to vector<3x128xf32>
    %c9 = arith.constant 9 : index
    %c0_9 = arith.constant 0 : index
    %22 = vector.load %arg4[%c9, %c0_9] : memref<16x128xf32, #tpu.memory_space<vmem>>, vector<3x128xf32>
    tpu.vector_store %arg4[%c9, %c0_9], %21 {strides = array<i32>} : memref<16x128xf32, #tpu.memory_space<vmem>>, vector<3x128xf32>,
    %23 = vector.extract_strided_slice %20 {offsets = [0, 0], sizes = [3, 128], strides = [1, 1]} : vector<8x128xf32> to vector<3x128xf32>
    %c12 = arith.constant 12 : index
    %c0_10 = arith.constant 0 : index
    %24 = vector.load %arg4[%c12, %c0_10] : memref<16x128xf32, #tpu.memory_space<vmem>>, vector<3x128xf32>
    tpu.vector_store %arg4[%c12, %c0_10], %23 {strides = array<i32>} : memref<16x128xf32, #tpu.memory_space<vmem>>, vector<3x128xf32>,
    %25 = vector.extract_strided_slice %19 {offsets = [3, 0], sizes = [3, 128], strides = [1, 1]} : vector<8x128xf32> to vector<3x128xf32>
    %c41 = arith.constant 41 : index
    %c0_11 = arith.constant 0 : index
    %26 = vector.load %arg5[%c41, %c0_11] : memref<48x128xf32, #tpu.memory_space<vmem>>, vector<3x128xf32>
    tpu.vector_store %arg5[%c41, %c0_11], %25 {strides = array<i32>} : memref<48x128xf32, #tpu.memory_space<vmem>>, vector<3x128xf32>,
    %27 = vector.extract_strided_slice %20 {offsets = [3, 0], sizes = [3, 128], strides = [1, 1]} : vector<8x128xf32> to vector<3x128xf32>
    %c44 = arith.constant 44 : index
    %c0_12 = arith.constant 0 : index
    %28 = vector.load %arg5[%c44, %c0_12] : memref<48x128xf32, #tpu.memory_space<vmem>>, vector<3x128xf32>
    tpu.vector_store %arg5[%c44, %c0_12], %27 {strides = array<i32>} : memref<48x128xf32, #tpu.memory_space<vmem>>, vector<3x128xf32>,
    %cst_13 = arith.constant 1.000000e+00 : f32
    %29 = vector.broadcast %cst_13 : f32 to vector<1x128xf32>
    %c15 = arith.constant 15 : index
    %c0_14 = arith.constant 0 : index
    %30 = vector.load %arg4[%c15, %c0_14] : memref<16x128xf32, #tpu.memory_space<vmem>>, vector<1x128xf32>
    tpu.vector_store %arg4[%c15, %c0_14], %29 {strides = array<i32>} : memref<16x128xf32, #tpu.memory_space<vmem>>, vector<1x128xf32>,
    %c47 = arith.constant 47 : index
    %c0_15 = arith.constant 0 : index
    %31 = vector.load %arg5[%c47, %c0_15] : memref<48x128xf32, #tpu.memory_space<vmem>>, vector<1x128xf32>
    tpu.vector_store %arg5[%c47, %c0_15], %29 {strides = array<i32>} : memref<48x128xf32, #tpu.memory_space<vmem>>, vector<1x128xf32>,
    %c0_16 = arith.constant 0 : index
    %c0_17 = arith.constant 0 : index
    %32 = vector.load %arg4[%c0_16, %c0_17] : memref<16x128xf32, #tpu.memory_space<vmem>>, vector<16x128xf32>
    %c0_18 = arith.constant 0 : index
    %c0_19 = arith.constant 0 : index
    %33 = vector.load %arg2[%c0_18, %c0_19] : memref<160x49xbf16, #tpu.memory_space<vmem>>, vector<32x16xbf16>
    %34 = arith.truncf %32 : vector<16x128xf32> to vector<16x128xbf16>
    %cst_20 = arith.constant dense<0.000000e+00> : vector<32x128xf32>
    %35 = tpu.matmul %33, %34, %cst_20 {dimension_numbers = #tpu.dot_dimension_numbers<[1], [0], [0], [1], [0, 0, 1, 1], [], []>} : vector<32x16xbf16>, vector<16x128xbf16>, vector<32x128xf32> -> vector<32x128xf32>
    %cst_21 = arith.constant 0.000000e+00 : f32
    %36 = vector.broadcast %cst_21 : f32 to vector<32x128xf32>
    %37 = arith.cmpf oge, %35, %36 : vector<32x128xf32>
    %cst_22 = arith.constant 2.000000e-01 : f32
    %38 = vector.broadcast %cst_22 : f32 to vector<32x128xf32>
    %39 = arith.mulf %38, %35 : vector<32x128xf32>
    %40 = arith.select %37, %35, %39 : vector<32x128xi1>, vector<32x128xf32>
    %c32_23 = arith.constant 32 : index
    %c0_24 = arith.constant 0 : index
    %41 = vector.load %arg2[%c32_23, %c0_24] : memref<160x49xbf16, #tpu.memory_space<vmem>>, vector<32x32xbf16>
    %42 = arith.truncf %40 : vector<32x128xf32> to vector<32x128xbf16>
    %cst_25 = arith.constant dense<0.000000e+00> : vector<32x128xf32>
    %43 = tpu.matmul %41, %42, %cst_25 {dimension_numbers = #tpu.dot_dimension_numbers<[1], [0], [0], [1], [0, 0, 1, 1], [], []>} : vector<32x32xbf16>, vector<32x128xbf16>, vector<32x128xf32> -> vector<32x128xf32>
    %c32_26 = arith.constant 32 : index
    %c48 = arith.constant 48 : index
    %44 = vector.load %arg2[%c32_26, %c48] : memref<160x49xbf16, #tpu.memory_space<vmem>>, vector<32x1xbf16>
    %45 = arith.extf %44 : vector<32x1xbf16> to vector<32x1xf32>
    %46 = vector.broadcast %45 : vector<32x1xf32> to vector<32x128xf32>
    %47 = arith.addf %43, %46 : vector<32x128xf32>
    %cst_27 = arith.constant 0.000000e+00 : f32
    %48 = vector.broadcast %cst_27 : f32 to vector<32x128xf32>
    %49 = arith.cmpf oge, %47, %48 : vector<32x128xf32>
    %cst_28 = arith.constant 2.000000e-01 : f32
    %50 = vector.broadcast %cst_28 : f32 to vector<32x128xf32>
    %51 = arith.mulf %50, %47 : vector<32x128xf32>
    %52 = arith.select %49, %47, %51 : vector<32x128xi1>, vector<32x128xf32>
    %c0_29 = arith.constant 0 : index
    %c0_30 = arith.constant 0 : index
    %53 = vector.load %arg5[%c0_29, %c0_30] : memref<48x128xf32, #tpu.memory_space<vmem>>, vector<32x128xf32>
    tpu.vector_store %arg5[%c0_29, %c0_30], %52 {strides = array<i32>} : memref<48x128xf32, #tpu.memory_space<vmem>>, vector<32x128xf32>,
    %c0_31 = arith.constant 0 : index
    %c0_32 = arith.constant 0 : index
    %54 = vector.load %arg5[%c0_31, %c0_32] : memref<48x128xf32, #tpu.memory_space<vmem>>, vector<48x128xf32>
    %c64 = arith.constant 64 : index
    %c0_33 = arith.constant 0 : index
    %55 = vector.load %arg2[%c64, %c0_33] : memref<160x49xbf16, #tpu.memory_space<vmem>>, vector<35x48xbf16>
    %56 = arith.truncf %54 : vector<48x128xf32> to vector<48x128xbf16>
    %cst_34 = arith.constant dense<0.000000e+00> : vector<35x128xf32>
    %57 = tpu.matmul %55, %56, %cst_34 {dimension_numbers = #tpu.dot_dimension_numbers<[1], [0], [0], [1], [0, 0, 1, 1], [], []>} : vector<35x48xbf16>, vector<48x128xbf16>, vector<35x128xf32> -> vector<35x128xf32>
    %58 = vector.extract_strided_slice %57 {offsets = [32, 0], sizes = [3, 128], strides = [1, 1]} : vector<35x128xf32> to vector<3x128xf32>
    %59 = arith.negf %58 : vector<3x128xf32>
    %60 = math.exp %59 : vector<3x128xf32>
    %cst_35 = arith.constant 1.000000e+00 : f32
    %61 = vector.broadcast %cst_35 : f32 to vector<3x128xf32>
    %62 = arith.addf %61, %60 : vector<3x128xf32>
    %63 = arith.divf %61, %62 : vector<3x128xf32>
    %64 = vector.extract_strided_slice %57 {offsets = [0, 0], sizes = [32, 128], strides = [1, 1]} : vector<35x128xf32> to vector<32x128xf32>
    %cst_36 = arith.constant 0.000000e+00 : f32
    %65 = vector.broadcast %cst_36 : f32 to vector<32x128xf32>
    %66 = arith.cmpf oge, %64, %65 : vector<32x128xf32>
    %cst_37 = arith.constant 2.000000e-01 : f32
    %67 = vector.broadcast %cst_37 : f32 to vector<32x128xf32>
    %68 = arith.mulf %67, %64 : vector<32x128xf32>
    %69 = arith.select %66, %64, %68 : vector<32x128xi1>, vector<32x128xf32>
    %c112 = arith.constant 112 : index
    %c0_38 = arith.constant 0 : index
    %70 = vector.load %arg2[%c112, %c0_38] : memref<160x49xbf16, #tpu.memory_space<vmem>>, vector<32x32xbf16>
    %71 = arith.truncf %69 : vector<32x128xf32> to vector<32x128xbf16>
    %cst_39 = arith.constant dense<0.000000e+00> : vector<32x128xf32>
    %72 = tpu.matmul %70, %71, %cst_39 {dimension_numbers = #tpu.dot_dimension_numbers<[1], [0], [0], [1], [0, 0, 1, 1], [], []>} : vector<32x32xbf16>, vector<32x128xbf16>, vector<32x128xf32> -> vector<32x128xf32>
    %c112_40 = arith.constant 112 : index
    %c48_41 = arith.constant 48 : index
    %73 = vector.load %arg2[%c112_40, %c48_41] : memref<160x49xbf16, #tpu.memory_space<vmem>>, vector<32x1xbf16>
    %74 = arith.extf %73 : vector<32x1xbf16> to vector<32x1xf32>
    %75 = vector.broadcast %74 : vector<32x1xf32> to vector<32x128xf32>
    %76 = arith.addf %72, %75 : vector<32x128xf32>
    %cst_42 = arith.constant 0.000000e+00 : f32
    %77 = vector.broadcast %cst_42 : f32 to vector<32x128xf32>
    %78 = arith.cmpf oge, %76, %77 : vector<32x128xf32>
    %cst_43 = arith.constant 2.000000e-01 : f32
    %79 = vector.broadcast %cst_43 : f32 to vector<32x128xf32>
    %80 = arith.mulf %79, %76 : vector<32x128xf32>
    %81 = arith.select %78, %76, %80 : vector<32x128xi1>, vector<32x128xf32>
    %c144 = arith.constant 144 : index
    %c0_44 = arith.constant 0 : index
    %82 = vector.load %arg2[%c144, %c0_44] : memref<160x49xbf16, #tpu.memory_space<vmem>>, vector<3x32xbf16>
    %83 = arith.truncf %81 : vector<32x128xf32> to vector<32x128xbf16>
    %cst_45 = arith.constant dense<0.000000e+00> : vector<3x128xf32>
    %84 = tpu.matmul %82, %83, %cst_45 {dimension_numbers = #tpu.dot_dimension_numbers<[1], [0], [0], [1], [0, 0, 1, 1], [], []>} : vector<3x32xbf16>, vector<32x128xbf16>, vector<3x128xf32> -> vector<3x128xf32>
    %c144_46 = arith.constant 144 : index
    %c48_47 = arith.constant 48 : index
    %85 = vector.load %arg2[%c144_46, %c48_47] : memref<160x49xbf16, #tpu.memory_space<vmem>>, vector<3x1xbf16>
    %86 = arith.extf %85 : vector<3x1xbf16> to vector<3x1xf32>
    %87 = vector.broadcast %86 : vector<3x1xf32> to vector<3x128xf32>
    %88 = arith.addf %84, %87 : vector<3x128xf32>
    %89 = arith.negf %88 : vector<3x128xf32>
    %90 = math.exp %89 : vector<3x128xf32>
    %cst_48 = arith.constant 1.000000e+00 : f32
    %91 = vector.broadcast %cst_48 : f32 to vector<3x128xf32>
    %92 = arith.addf %91, %90 : vector<3x128xf32>
    %93 = arith.divf %91, %92 : vector<3x128xf32>
    %94 = arith.addf %63, %93 : vector<3x128xf32>
    %cst_49 = arith.constant 0.000000e+00 : f32
    %95 = vector.broadcast %cst_49 : f32 to vector<3x128xf32>
    %96 = arith.maximumf %94, %95 : vector<3x128xf32>
    %c0_50 = arith.constant 0 : index
    %c0_51 = arith.constant 0 : index
    %97 = vector.load %arg3[%c0_50, %c0_51] : memref<3x128xf32, #tpu.memory_space<vmem>>, vector<3x128xf32>
    tpu.vector_store %arg3[%c0_50, %c0_51], %96 {strides = array<i32>} : memref<3x128xf32, #tpu.memory_space<vmem>>, vector<3x128xf32>,
    return
  }
  func.func @transform_0(%arg0: i32) -> (i32, i32) {
    %c0_i32 = arith.constant 0 : i32
    %c0_i32_0 = arith.constant 0 : i32
    return %c0_i32, %arg0 : i32, i32
  }
  func.func @transform_1(%arg0: i32) -> (i32, i32) {
    %c0_i32 = arith.constant 0 : i32
    %c0_i32_0 = arith.constant 0 : i32
    %c0_i32_1 = arith.constant 0 : i32
    return %c0_i32, %c0_i32_0 : i32, i32
  }
  func.func @transform_2(%arg0: i32) -> (i32, i32) {
    %c0_i32 = arith.constant 0 : i32
    %c0_i32_0 = arith.constant 0 : i32
    return %c0_i32, %arg0 : i32, i32
  }
}

</mosaic_0001>

<llo_original>
// kernel: apply.1
$region0: #{apply.1}
  #allocation0 [shape = 'u32[]', space=smem, size = 0x4, offset = 0x4, fixed_abs, tag = 'smem constant byte address 0x4 - core index']
  #allocation1 [shape = 'u32[72,128]{1,0:T(1,128)}', space=vmem, size = 0x9000, scoped, tag = 'internal scratch']
  #allocation2 [shape = 'f32[16,128]{1,0:T(8,128)}', space=vmem, size = 0x2000, scoped, tag = 'scratch operand']
  #allocation3 [shape = 'f32[48,128]{1,0:T(8,128)}', space=vmem, size = 0x6000, scoped, tag = 'scratch operand']
  %s0 = inlined_call_operand.vmem [shape: f32[8,128], index: 0, kind: input, shape index: {}]
  %s1 = inlined_call_operand.vmem [shape: bf16[160,49], index: 1, kind: input, shape index: {}]
  %s2 = inlined_call_operand.vmem [shape: f32[3,128], index: 2, kind: output, shape index: {}]
  %s3 = sld [smem:[#allocation0]]
  $region18: #{apply.1} parent=0
    _
  %s5 = ssub.s32 1, %s3
  %s6 = scalar_select 0, %s5, %s3
  // Predicated region
  $region2: #{apply.1} parent=0 // pred_check
    _
  $region3: #{apply.1} parent=0 // pred_check_branch
    %8 = sbr.rel (0) target = $region5
  $region4: #{apply.1} parent=0 // pred_region
    _
  $region5: #{apply.1} parent=0 // pred_fallthru
    _
  // Predicated region
  $region6: #{apply.1} parent=0 // pred_check
    _
  $region7: #{apply.1} parent=0 // pred_check_branch
    %10 = sbr.rel (0) target = $region9
  $region8: #{apply.1} parent=0 // pred_region
    _
  $region9: #{apply.1} parent=0 // pred_fallthru
    _
  %v12 = vld [vmem:[%s0] sm:$0xff]
  %13 = vst [vmem:[#allocation2] sm:$0x7] %v12
  %14 = vst [vmem:[#allocation3 + $0x1d] sm:$0x38] %v12
  %v15 = vand.u32 2147483647, %v12
  %vm16 = vcmp.le.f32.partialorder %v15, 0.7853982
  %vm17 = vcmp.lt.s32.totalorder %v12, 0
  %v18 = vand.u32 %v12, 2139095040
  %v19 = vshrl.u32 %v18, 23
  %v20 = vsub.s32 %v19, 127
  %v21 = vand.u32 2147483647, %v12
  %v22 = vand.u32 %v21, 8388607
  %v23 = vor.u32 %v22, 8388608
  %v24 = vsub.s32 0, %v23
  %v25 = vadd.s32 %v20, 1
  %vm26 = vcmp.gt.s32.totalorder %v25, 0
  %v27 = vsel %vm26, %v25, 0
  %v28 = vshrl.u32 %v27, 5
  %v29 = vand.u32 %v27, 31
  %v30 = vsub.s32 32, %v29
  %v31 = vshrl.u32 683565275, %v30
  %v32 = vshll.u32 683565275, %v29
  %v33 = vshrl.u32 2475754826, %v30
  %v34 = vor.u32 %v32, %v33
  %v35 = vshll.u32 2475754826, %v29
  %v36 = vshrl.u32 2131351028, %v30
  %v37 = vor.u32 %v35, %v36
  %v38 = vshll.u32 2131351028, %v29
  %v39 = vshrl.u32 2102212464, %v30
  %v40 = vor.u32 %v38, %v39
  %v41 = vshll.u32 2102212464, %v29
  %v42 = vshrl.u32 920167782, %v30
  %v43 = vor.u32 %v41, %v42
  %v44 = vshll.u32 920167782, %v29
  %v45 = vshrl.u32 1326507024, %v30
  %v46 = vor.u32 %v44, %v45
  %vm47 = vcmp.lt.s32.totalorder %v28, 1
  %vm48 = vcmp.lt.s32.totalorder %v28, 2
  %vm49 = vcmp.lt.s32.totalorder %v28, 3
  %vm50 = vcmp.lt.s32.totalorder %v28, 4
  %v51 = vsel %vm47, %v31, %v34
  %v52 = vsel %vm50, %v40, 2102212464
  %v53 = vsel %vm49, %v37, %v52
  %v54 = vsel %vm48, %v51, %v53
  %v55 = vsel %vm47, %v34, %v37
  %v56 = vsel %vm50, %v43, 920167782
  %v57 = vsel %vm49, %v40, %v56
  %v58 = vsel %vm48, %v55, %v57
  %v59 = vsel %vm47, %v37, %v40
  %v60 = vsel %vm50, %v46, 1326507024
  %v61 = vsel %vm49, %v43, %v60
  %v62 = vsel %vm48, %v59, %v61
  %v63 = vshll.u32 %v23, 8
  %v64 = vand.u32 %v63, 65535
  %v65 = vshrl.u32 %v63, 16
  %v66 = vand.u32 %v62, 65535
  %v67 = vshrl.u32 %v62, 16
  %v68 = vmul.u32 %v64, %v66
  %v69 = vmul.u32 %v64, %v67
  %v70 = vmul.u32 %v65, %v66
  %v71 = vmul.u32 %v65, %v67
  %v72 = vshll.u32 %v69, 16
  %v73 = vshrl.u32 %v69, 16
  %v74 = vshll.u32 %v70, 16
  %v75 = vshrl.u32 %v70, 16
  %vm76 = vc.u32 %v68, %v72
  %v77 = vsel %vm76, 1, 0
  %v78 = vadd.s32 %v68, %v72
  %v79 = vadd.s32 %v71, %v77
  %vm80 = vc.u32 %v78, %v74
  %v81 = vsel %vm80, 1, 0
  %v82 = vadd.s32 %v78, %v74
  %v83 = vadd.s32 %v79, %v81
  %v84 = vadd.s32 %v83, %v73
  %v85 = vadd.s32 %v84, %v75
  %v86 = vand.u32 %v63, 65535
  %v87 = vshrl.u32 %v63, 16
  %v88 = vand.u32 %v58, 65535
  %v89 = vshrl.u32 %v58, 16
  %v90 = vmul.u32 %v86, %v88
  %v91 = vmul.u32 %v86, %v89
  %v92 = vmul.u32 %v87, %v88
  %v93 = vmul.u32 %v87, %v89
  %v94 = vshll.u32 %v91, 16
  %v95 = vshrl.u32 %v91, 16
  %v96 = vshll.u32 %v92, 16
  %v97 = vshrl.u32 %v92, 16
  %vm98 = vc.u32 %v90, %v94
  %v99 = vsel %vm98, 1, 0
  %v100 = vadd.s32 %v90, %v94
  %v101 = vadd.s32 %v93, %v99
  %vm102 = vc.u32 %v100, %v96
  %v103 = vsel %vm102, 1, 0
  %v104 = vadd.s32 %v100, %v96
  %v105 = vadd.s32 %v101, %v103
  %v106 = vadd.s32 %v105, %v95
  %v107 = vadd.s32 %v106, %v97
  %v108 = vmul.u32 %v63, %v54
  %v109 = vadd.s32 %v85, %v104
  %vm110 = vc.u32 %v85, %v104
  %v111 = vadd.s32 %v107, 1
  %v112 = vsel %vm110, %v111, %v107
  %v113 = vadd.s32 %v108, %v112
  %v114 = vadd.s32 %v113, 536870912
  %v115 = vshrl.u32 %v114, 30
  %v116 = vshll.u32 %v115, 30
  %v117 = vsub.s32 %v113, %v116
  %vm118 = vcmp.lt.s32.totalorder %v117, 0
  %v119 = vsub.s32 0, %v117
  %v120 = vsel %vm118, %v119, %v117
  %v121 = vclz %v120
  %v122 = vsub.s32 %v121, 2
  %vm123 = vcmp.gt.s32.totalorder 0, %v122
  %v124 = vsel %vm123, 0, %v122
  %v125 = vsub.s32 32, %v124
  %v126 = vshll.u32 %v117, %v124
  %v127 = vshrl.u32 %v109, %v125
  %v128 = vor.u32 %v126, %v127
  %v129 = vsub.s32 4294967266, %v124
  %v130 = vadd.s32 %v129, 127
  %v131 = vshll.u32 %v130, 23
  %v132 = vor.u32 4788187, %v131
  %v133 = vand.u32 2147483647, %v132
  %v135 = vcvt.s32.f32 %v128
  %v136 = vmul.f32 %v135, %v133
  %v137 = vxor.u32 %v136, 2147483648
  %v138 = vsel %vm17, %v137, %v136
  %v139 = vsub.s32 4, %v115
  %v140 = vsel %vm17, %v139, %v115
  %v141 = vsel %vm16, %v12, %v138
  %v142 = vsel %vm16, 0, %v140
  %v143 = vmul.f32 %v141, %v141
  %v144 = vmul.f32 %v143, -0.001358992
  %v145 = vadd.f32 %v144, 0.041655596
  %v146 = vmul.f32 %v143, %v145
  %v147 = vadd.f32 %v146, -0.4999988
  %v148 = vmul.f32 %v143, %v147
  %v149 = vadd.f32 1.0, %v148
  %v150 = vmul.f32 %v141, %v141
  %v151 = vmul.f32 %v150, -0.00019511016
  %v152 = vadd.f32 %v151, 0.008332121
  %v153 = vmul.f32 %v150, %v152
  %v154 = vadd.f32 %v153, -0.16666654
  %v155 = vmul.f32 %v150, %v154
  %v156 = vadd.f32 %v155, 1.0
  %v157 = vmul.f32 %v156, %v141
  %vm158 = vweird.f32 %v12
  %v159 = vadd.s32 %v142, 3
  %v160 = vand.u32 %v159, 3
  %vm161 = vcmp.lt.s32.totalorder %v160, 2
  %vm162 = vcmp.eq.s32.totalorder %v160, 0
  %v163 = vxor.u32 %v157, 2147483648
  %v164 = vsel %vm162, %v149, %v163
  %vm165 = vcmp.eq.s32.totalorder %v160, 2
  %v166 = vxor.u32 %v149, 2147483648
  %v167 = vsel %vm165, %v166, %v157
  %v168 = vsel %vm161, %v164, %v167
  %v169 = vsel %vm158, nan, %v168
  %v170 = vand.u32 2147483647, %v12
  %vm171 = vcmp.le.f32.partialorder %v170, 0.7853982
  %vm172 = vcmp.lt.s32.totalorder %v12, 0
  %v173 = vand.u32 %v12, 2139095040
  %v174 = vshrl.u32 %v173, 23
  %v175 = vsub.s32 %v174, 127
  %v176 = vand.u32 2147483647, %v12
  %v177 = vand.u32 %v176, 8388607
  %v178 = vor.u32 %v177, 8388608
  %v179 = vsub.s32 0, %v178
  %v180 = vadd.s32 %v175, 1
  %vm181 = vcmp.gt.s32.totalorder %v180, 0
  %v182 = vsel %vm181, %v180, 0
  %v183 = vshrl.u32 %v182, 5
  %v184 = vand.u32 %v182, 31
  %v185 = vsub.s32 32, %v184
  %v186 = vshrl.u32 683565275, %v185
  %v187 = vshll.u32 683565275, %v184
  %v188 = vshrl.u32 2475754826, %v185
  %v189 = vor.u32 %v187, %v188
  %v190 = vshll.u32 2475754826, %v184
  %v191 = vshrl.u32 2131351028, %v185
  %v192 = vor.u32 %v190, %v191
  %v193 = vshll.u32 2131351028, %v184
  %v194 = vshrl.u32 2102212464, %v185
  %v195 = vor.u32 %v193, %v194
  %v196 = vshll.u32 2102212464, %v184
  %v197 = vshrl.u32 920167782, %v185
  %v198 = vor.u32 %v196, %v197
  %v199 = vshll.u32 920167782, %v184
  %v200 = vshrl.u32 1326507024, %v185
  %v201 = vor.u32 %v199, %v200
  %vm202 = vcmp.lt.s32.totalorder %v183, 1
  %vm203 = vcmp.lt.s32.totalorder %v183, 2
  %vm204 = vcmp.lt.s32.totalorder %v183, 3
  %vm205 = vcmp.lt.s32.totalorder %v183, 4
  %v206 = vsel %vm202, %v186, %v189
  %v207 = vsel %vm205, %v195, 2102212464
  %v208 = vsel %vm204, %v192, %v207
  %v209 = vsel %vm203, %v206, %v208
  %v210 = vsel %vm202, %v189, %v192
  %v211 = vsel %vm205, %v198, 920167782
  %v212 = vsel %vm204, %v195, %v211
  %v213 = vsel %vm203, %v210, %v212
  %v214 = vsel %vm202, %v192, %v195
  %v215 = vsel %vm205, %v201, 1326507024
  %v216 = vsel %vm204, %v198, %v215
  %v217 = vsel %vm203, %v214, %v216
  %v218 = vshll.u32 %v178, 8
  %v219 = vand.u32 %v218, 65535
  %v220 = vshrl.u32 %v218, 16
  %v221 = vand.u32 %v217, 65535
  %v222 = vshrl.u32 %v217, 16
  %v223 = vmul.u32 %v219, %v221
  %v224 = vmul.u32 %v219, %v222
  %v225 = vmul.u32 %v220, %v221
  %v226 = vmul.u32 %v220, %v222
  %v227 = vshll.u32 %v224, 16
  %v228 = vshrl.u32 %v224, 16
  %v229 = vshll.u32 %v225, 16
  %v230 = vshrl.u32 %v225, 16
  %vm231 = vc.u32 %v223, %v227
  %v232 = vsel %vm231, 1, 0
  %v233 = vadd.s32 %v223, %v227
  %v234 = vadd.s32 %v226, %v232
  %vm235 = vc.u32 %v233, %v229
  %v236 = vsel %vm235, 1, 0
  %v237 = vadd.s32 %v233, %v229
  %v238 = vadd.s32 %v234, %v236
  %v239 = vadd.s32 %v238, %v228
  %v240 = vadd.s32 %v239, %v230
  %v241 = vand.u32 %v218, 65535
  %v242 = vshrl.u32 %v218, 16
  %v243 = vand.u32 %v213, 65535
  %v244 = vshrl.u32 %v213, 16
  %v245 = vmul.u32 %v241, %v243
  %v246 = vmul.u32 %v241, %v244
  %v247 = vmul.u32 %v242, %v243
  %v248 = vmul.u32 %v242, %v244
  %v249 = vshll.u32 %v246, 16
  %v250 = vshrl.u32 %v246, 16
  %v251 = vshll.u32 %v247, 16
  %v252 = vshrl.u32 %v247, 16
  %vm253 = vc.u32 %v245, %v249
  %v254 = vsel %vm253, 1, 0
  %v255 = vadd.s32 %v245, %v249
  %v256 = vadd.s32 %v248, %v254
  %vm257 = vc.u32 %v255, %v251
  %v258 = vsel %vm257, 1, 0
  %v259 = vadd.s32 %v255, %v251
  %v260 = vadd.s32 %v256, %v258
  %v261 = vadd.s32 %v260, %v250
  %v262 = vadd.s32 %v261, %v252
  %v263 = vmul.u32 %v218, %v209
  %v264 = vadd.s32 %v240, %v259
  %vm265 = vc.u32 %v240, %v259
  %v266 = vadd.s32 %v262, 1
  %v267 = vsel %vm265, %v266, %v262
  %v268 = vadd.s32 %v263, %v267
  %v269 = vadd.s32 %v268, 536870912
  %v270 = vshrl.u32 %v269, 30
  %v271 = vshll.u32 %v270, 30
  %v272 = vsub.s32 %v268, %v271
  %vm273 = vcmp.lt.s32.totalorder %v272, 0
  %v274 = vsub.s32 0, %v272
  %v275 = vsel %vm273, %v274, %v272
  %v276 = vclz %v275
  %v277 = vsub.s32 %v276, 2
  %vm278 = vcmp.gt.s32.totalorder 0, %v277
  %v279 = vsel %vm278, 0, %v277
  %v280 = vsub.s32 32, %v279
  %v281 = vshll.u32 %v272, %v279
  %v282 = vshrl.u32 %v264, %v280
  %v283 = vor.u32 %v281, %v282
  %v284 = vsub.s32 4294967266, %v279
  %v285 = vadd.s32 %v284, 127
  %v286 = vshll.u32 %v285, 23
  %v287 = vor.u32 4788187, %v286
  %v288 = vand.u32 2147483647, %v287
  %v290 = vcvt.s32.f32 %v283
  %v291 = vmul.f32 %v290, %v288
  %v292 = vxor.u32 %v291, 2147483648
  %v293 = vsel %vm172, %v292, %v291
  %v294 = vsub.s32 4, %v270
  %v295 = vsel %vm172, %v294, %v270
  %v296 = vsel %vm171, %v12, %v293
  %v297 = vsel %vm171, 0, %v295
  %v298 = vmul.f32 %v296, %v296
  %v299 = vmul.f32 %v298, -0.001358992
  %v300 = vadd.f32 %v299, 0.041655596
  %v301 = vmul.f32 %v298, %v300
  %v302 = vadd.f32 %v301, -0.4999988
  %v303 = vmul.f32 %v298, %v302
  %v304 = vadd.f32 1.0, %v303
  %v305 = vmul.f32 %v296, %v296
  %v306 = vmul.f32 %v305, -0.00019511016
  %v307 = vadd.f32 %v306, 0.008332121
  %v308 = vmul.f32 %v305, %v307
  %v309 = vadd.f32 %v308, -0.16666654
  %v310 = vmul.f32 %v305, %v309
  %v311 = vadd.f32 %v310, 1.0
  %v312 = vmul.f32 %v311, %v296
  %vm313 = vweird.f32 %v12
  %v314 = vand.u32 %v297, 3
  %vm315 = vcmp.lt.s32.totalorder %v314, 2
  %vm316 = vcmp.eq.s32.totalorder %v314, 0
  %v317 = vxor.u32 %v312, 2147483648
  %v318 = vsel %vm316, %v304, %v317
  %vm319 = vcmp.eq.s32.totalorder %v314, 2
  %v320 = vxor.u32 %v304, 2147483648
  %v321 = vsel %vm319, %v320, %v312
  %v322 = vsel %vm315, %v318, %v321
  %v323 = vsel %vm313, nan, %v322
  %324 = vst [vmem:[#allocation2 + $0x3] sm:$0x7] %v169
  %325 = vst [vmem:[#allocation2 + $0x6] sm:$0x7] %v323
  %326 = vst [vmem:[#allocation3 + $0x20] sm:$0x38] %v169
  %327 = vst [vmem:[#allocation3 + $0x23] sm:$0x38] %v323
  %v328 = vmul.f32 %v12, 2.0
  %v329 = vand.u32 2147483647, %v328
  %vm330 = vcmp.le.f32.partialorder %v329, 0.7853982
  %vm331 = vcmp.lt.s32.totalorder %v328, 0
  %v332 = vand.u32 %v328, 2139095040
  %v333 = vshrl.u32 %v332, 23
  %v334 = vsub.s32 %v333, 127
  %v335 = vand.u32 2147483647, %v328
  %v336 = vand.u32 %v335, 8388607
  %v337 = vor.u32 %v336, 8388608
  %v338 = vsub.s32 0, %v337
  %v339 = vadd.s32 %v334, 1
  %vm340 = vcmp.gt.s32.totalorder %v339, 0
  %v341 = vsel %vm340, %v339, 0
  %v342 = vshrl.u32 %v341, 5
  %v343 = vand.u32 %v341, 31
  %v344 = vsub.s32 32, %v343
  %v345 = vshrl.u32 683565275, %v344
  %v346 = vshll.u32 683565275, %v343
  %v347 = vshrl.u32 2475754826, %v344
  %v348 = vor.u32 %v346, %v347
  %v349 = vshll.u32 2475754826, %v343
  %v350 = vshrl.u32 2131351028, %v344
  %v351 = vor.u32 %v349, %v350
  %v352 = vshll.u32 2131351028, %v343
  %v353 = vshrl.u32 2102212464, %v344
  %v354 = vor.u32 %v352, %v353
  %v355 = vshll.u32 2102212464, %v343
  %v356 = vshrl.u32 920167782, %v344
  %v357 = vor.u32 %v355, %v356
  %v358 = vshll.u32 920167782, %v343
  %v359 = vshrl.u32 1326507024, %v344
  %v360 = vor.u32 %v358, %v359
  %vm361 = vcmp.lt.s32.totalorder %v342, 1
  %vm362 = vcmp.lt.s32.totalorder %v342, 2
  %vm363 = vcmp.lt.s32.totalorder %v342, 3
  %vm364 = vcmp.lt.s32.totalorder %v342, 4
  %v365 = vsel %vm361, %v345, %v348
  %v366 = vsel %vm364, %v354, 2102212464
  %v367 = vsel %vm363, %v351, %v366
  %v368 = vsel %vm362, %v365, %v367
  %v369 = vsel %vm361, %v348, %v351
  %v370 = vsel %vm364, %v357, 920167782
  %v371 = vsel %vm363, %v354, %v370
  %v372 = vsel %vm362, %v369, %v371
  %v373 = vsel %vm361, %v351, %v354
  %v374 = vsel %vm364, %v360, 1326507024
  %v375 = vsel %vm363, %v357, %v374
  %v376 = vsel %vm362, %v373, %v375
  %v377 = vshll.u32 %v337, 8
  %v378 = vand.u32 %v377, 65535
  %v379 = vshrl.u32 %v377, 16
  %v380 = vand.u32 %v376, 65535
  %v381 = vshrl.u32 %v376, 16
  %v382 = vmul.u32 %v378, %v380
  %v383 = vmul.u32 %v378, %v381
  %v384 = vmul.u32 %v379, %v380
  %v385 = vmul.u32 %v379, %v381
  %v386 = vshll.u32 %v383, 16
  %v387 = vshrl.u32 %v383, 16
  %v388 = vshll.u32 %v384, 16
  %v389 = vshrl.u32 %v384, 16
  %vm390 = vc.u32 %v382, %v386
  %v391 = vsel %vm390, 1, 0
  %v392 = vadd.s32 %v382, %v386
  %v393 = vadd.s32 %v385, %v391
  %vm394 = vc.u32 %v392, %v388
  %v395 = vsel %vm394, 1, 0
  %v396 = vadd.s32 %v392, %v388
  %v397 = vadd.s32 %v393, %v395
  %v398 = vadd.s32 %v397, %v387
  %v399 = vadd.s32 %v398, %v389
  %v400 = vand.u32 %v377, 65535
  %v401 = vshrl.u32 %v377, 16
  %v402 = vand.u32 %v372, 65535
  %v403 = vshrl.u32 %v372, 16
  %v404 = vmul.u32 %v400, %v402
  %v405 = vmul.u32 %v400, %v403
  %v406 = vmul.u32 %v401, %v402
  %v407 = vmul.u32 %v401, %v403
  %v408 = vshll.u32 %v405, 16
  %v409 = vshrl.u32 %v405, 16
  %v410 = vshll.u32 %v406, 16
  %v411 = vshrl.u32 %v406, 16
  %vm412 = vc.u32 %v404, %v408
  %v413 = vsel %vm412, 1, 0
  %v414 = vadd.s32 %v404, %v408
  %v415 = vadd.s32 %v407, %v413
  %vm416 = vc.u32 %v414, %v410
  %v417 = vsel %vm416, 1, 0
  %v418 = vadd.s32 %v414, %v410
  %v419 = vadd.s32 %v415, %v417
  %v420 = vadd.s32 %v419, %v409
  %v421 = vadd.s32 %v420, %v411
  %v422 = vmul.u32 %v377, %v368
  %v423 = vadd.s32 %v399, %v418
  %vm424 = vc.u32 %v399, %v418
  %v425 = vadd.s32 %v421, 1
  %v426 = vsel %vm424, %v425, %v421
  %v427 = vadd.s32 %v422, %v426
  %v428 = vadd.s32 %v427, 536870912
  %v429 = vshrl.u32 %v428, 30
  %v430 = vshll.u32 %v429, 30
  %v431 = vsub.s32 %v427, %v430
  %vm432 = vcmp.lt.s32.totalorder %v431, 0
  %v433 = vsub.s32 0, %v431
  %v434 = vsel %vm432, %v433, %v431
  %v435 = vclz %v434
  %v436 = vsub.s32 %v435, 2
  %vm437 = vcmp.gt.s32.totalorder 0, %v436
  %v438 = vsel %vm437, 0, %v436
  %v439 = vsub.s32 32, %v438
  %v440 = vshll.u32 %v431, %v438
  %v441 = vshrl.u32 %v423, %v439
  %v442 = vor.u32 %v440, %v441
  %v443 = vsub.s32 4294967266, %v438
  %v444 = vadd.s32 %v443, 127
  %v445 = vshll.u32 %v444, 23
  %v446 = vor.u32 4788187, %v445
  %v447 = vand.u32 2147483647, %v446
  %v449 = vcvt.s32.f32 %v442
  %v450 = vmul.f32 %v449, %v447
  %v451 = vxor.u32 %v450, 2147483648
  %v452 = vsel %vm331, %v451, %v450
  %v453 = vsub.s32 4, %v429
  %v454 = vsel %vm331, %v453, %v429
  %v455 = vsel %vm330, %v328, %v452
  %v456 = vsel %vm330, 0, %v454
  %v457 = vmul.f32 %v455, %v455
  %v458 = vmul.f32 %v457, -0.001358992
  %v459 = vadd.f32 %v458, 0.041655596
  %v460 = vmul.f32 %v457, %v459
  %v461 = vadd.f32 %v460, -0.4999988
  %v462 = vmul.f32 %v457, %v461
  %v463 = vadd.f32 1.0, %v462
  %v464 = vmul.f32 %v455, %v455
  %v465 = vmul.f32 %v464, -0.00019511016
  %v466 = vadd.f32 %v465, 0.008332121
  %v467 = vmul.f32 %v464, %v466
  %v468 = vadd.f32 %v467, -0.16666654
  %v469 = vmul.f32 %v464, %v468
  %v470 = vadd.f32 %v469, 1.0
  %v471 = vmul.f32 %v470, %v455
  %vm472 = vweird.f32 %v328
  %v473 = vadd.s32 %v456, 3
  %v474 = vand.u32 %v473, 3
  %vm475 = vcmp.lt.s32.totalorder %v474, 2
  %vm476 = vcmp.eq.s32.totalorder %v474, 0
  %v477 = vxor.u32 %v471, 2147483648
  %v478 = vsel %vm476, %v463, %v477
  %vm479 = vcmp.eq.s32.totalorder %v474, 2
  %v480 = vxor.u32 %v463, 2147483648
  %v481 = vsel %vm479, %v480, %v471
  %v482 = vsel %vm475, %v478, %v481
  %v483 = vsel %vm472, nan, %v482
  %v484 = vand.u32 2147483647, %v328
  %vm485 = vcmp.le.f32.partialorder %v484, 0.7853982
  %vm486 = vcmp.lt.s32.totalorder %v328, 0
  %v487 = vand.u32 %v328, 2139095040
  %v488 = vshrl.u32 %v487, 23
  %v489 = vsub.s32 %v488, 127
  %v490 = vand.u32 2147483647, %v328
  %v491 = vand.u32 %v490, 8388607
  %v492 = vor.u32 %v491, 8388608
  %v493 = vsub.s32 0, %v492
  %v494 = vadd.s32 %v489, 1
  %vm495 = vcmp.gt.s32.totalorder %v494, 0
  %v496 = vsel %vm495, %v494, 0
  %v497 = vshrl.u32 %v496, 5
  %v498 = vand.u32 %v496, 31
  %v499 = vsub.s32 32, %v498
  %v500 = vshrl.u32 683565275, %v499
  %v501 = vshll.u32 683565275, %v498
  %v502 = vshrl.u32 2475754826, %v499
  %v503 = vor.u32 %v501, %v502
  %v504 = vshll.u32 2475754826, %v498
  %v505 = vshrl.u32 2131351028, %v499
  %v506 = vor.u32 %v504, %v505
  %v507 = vshll.u32 2131351028, %v498
  %v508 = vshrl.u32 2102212464, %v499
  %v509 = vor.u32 %v507, %v508
  %v510 = vshll.u32 2102212464, %v498
  %v511 = vshrl.u32 920167782, %v499
  %v512 = vor.u32 %v510, %v511
  %v513 = vshll.u32 920167782, %v498
  %v514 = vshrl.u32 1326507024, %v499
  %v515 = vor.u32 %v513, %v514
  %vm516 = vcmp.lt.s32.totalorder %v497, 1
  %vm517 = vcmp.lt.s32.totalorder %v497, 2
  %vm518 = vcmp.lt.s32.totalorder %v497, 3
  %vm519 = vcmp.lt.s32.totalorder %v497, 4
  %v520 = vsel %vm516, %v500, %v503
  %v521 = vsel %vm519, %v509, 2102212464
  %v522 = vsel %vm518, %v506, %v521
  %v523 = vsel %vm517, %v520, %v522
  %v524 = vsel %vm516, %v503, %v506
  %v525 = vsel %vm519, %v512, 920167782
  %v526 = vsel %vm518, %v509, %v525
  %v527 = vsel %vm517, %v524, %v526
  %v528 = vsel %vm516, %v506, %v509
  %v529 = vsel %vm519, %v515, 1326507024
  %v530 = vsel %vm518, %v512, %v529
  %v531 = vsel %vm517, %v528, %v530
  %v532 = vshll.u32 %v492, 8
  %v533 = vand.u32 %v532, 65535
  %v534 = vshrl.u32 %v532, 16
  %v535 = vand.u32 %v531, 65535
  %v536 = vshrl.u32 %v531, 16
  %v537 = vmul.u32 %v533, %v535
  %v538 = vmul.u32 %v533, %v536
  %v539 = vmul.u32 %v534, %v535
  %v540 = vmul.u32 %v534, %v536
  %v541 = vshll.u32 %v538, 16
  %v542 = vshrl.u32 %v538, 16
  %v543 = vshll.u32 %v539, 16
  %v544 = vshrl.u32 %v539, 16
  %vm545 = vc.u32 %v537, %v541
  %v546 = vsel %vm545, 1, 0
  %v547 = vadd.s32 %v537, %v541
  %v548 = vadd.s32 %v540, %v546
  %vm549 = vc.u32 %v547, %v543
  %v550 = vsel %vm549, 1, 0
  %v551 = vadd.s32 %v547, %v543
  %v552 = vadd.s32 %v548, %v550
  %v553 = vadd.s32 %v552, %v542
  %v554 = vadd.s32 %v553, %v544
  %v555 = vand.u32 %v532, 65535
  %v556 = vshrl.u32 %v532, 16
  %v557 = vand.u32 %v527, 65535
  %v558 = vshrl.u32 %v527, 16
  %v559 = vmul.u32 %v555, %v557
  %v560 = vmul.u32 %v555, %v558
  %v561 = vmul.u32 %v556, %v557
  %v562 = vmul.u32 %v556, %v558
  %v563 = vshll.u32 %v560, 16
  %v564 = vshrl.u32 %v560, 16
  %v565 = vshll.u32 %v561, 16
  %v566 = vshrl.u32 %v561, 16
  %vm567 = vc.u32 %v559, %v563
  %v568 = vsel %vm567, 1, 0
  %v569 = vadd.s32 %v559, %v563
  %v570 = vadd.s32 %v562, %v568
  %vm571 = vc.u32 %v569, %v565
  %v572 = vsel %vm571, 1, 0
  %v573 = vadd.s32 %v569, %v565
  %v574 = vadd.s32 %v570, %v572
  %v575 = vadd.s32 %v574, %v564
  %v576 = vadd.s32 %v575, %v566
  %v577 = vmul.u32 %v532, %v523
  %v578 = vadd.s32 %v554, %v573
  %vm579 = vc.u32 %v554, %v573
  %v580 = vadd.s32 %v576, 1
  %v581 = vsel %vm579, %v580, %v576
  %v582 = vadd.s32 %v577, %v581
  %v583 = vadd.s32 %v582, 536870912
  %v584 = vshrl.u32 %v583, 30
  %v585 = vshll.u32 %v584, 30
  %v586 = vsub.s32 %v582, %v585
  %vm587 = vcmp.lt.s32.totalorder %v586, 0
  %v588 = vsub.s32 0, %v586
  %v589 = vsel %vm587, %v588, %v586
  %v590 = vclz %v589
  %v591 = vsub.s32 %v590, 2
  %vm592 = vcmp.gt.s32.totalorder 0, %v591
  %v593 = vsel %vm592, 0, %v591
  %v594 = vsub.s32 32, %v593
  %v595 = vshll.u32 %v586, %v593
  %v596 = vshrl.u32 %v578, %v594
  %v597 = vor.u32 %v595, %v596
  %v598 = vsub.s32 4294967266, %v593
  %v599 = vadd.s32 %v598, 127
  %v600 = vshll.u32 %v599, 23
  %v601 = vor.u32 4788187, %v600
  %v602 = vand.u32 2147483647, %v601
  %v604 = vcvt.s32.f32 %v597
  %v605 = vmul.f32 %v604, %v602
  %v606 = vxor.u32 %v605, 2147483648
  %v607 = vsel %vm486, %v606, %v605
  %v608 = vsub.s32 4, %v584
  %v609 = vsel %vm486, %v608, %v584
  %v610 = vsel %vm485, %v328, %v607
  %v611 = vsel %vm485, 0, %v609
  %v612 = vmul.f32 %v610, %v610
  %v613 = vmul.f32 %v612, -0.001358992
  %v614 = vadd.f32 %v613, 0.041655596
  %v615 = vmul.f32 %v612, %v614
  %v616 = vadd.f32 %v615, -0.4999988
  %v617 = vmul.f32 %v612, %v616
  %v618 = vadd.f32 1.0, %v617
  %v619 = vmul.f32 %v610, %v610
  %v620 = vmul.f32 %v619, -0.00019511016
  %v621 = vadd.f32 %v620, 0.008332121
  %v622 = vmul.f32 %v619, %v621
  %v623 = vadd.f32 %v622, -0.16666654
  %v624 = vmul.f32 %v619, %v623
  %v625 = vadd.f32 %v624, 1.0
  %v626 = vmul.f32 %v625, %v610
  %vm627 = vweird.f32 %v328
  %v628 = vand.u32 %v611, 3
  %vm629 = vcmp.lt.s32.totalorder %v628, 2
  %vm630 = vcmp.eq.s32.totalorder %v628, 0
  %v631 = vxor.u32 %v626, 2147483648
  %v632 = vsel %vm630, %v618, %v631
  %vm633 = vcmp.eq.s32.totalorder %v628, 2
  %v634 = vxor.u32 %v618, 2147483648
  %v635 = vsel %vm633, %v634, %v626
  %v636 = vsel %vm629, %v632, %v635
  %v637 = vsel %vm627, nan, %v636
  %638 = vst [vmem:[#allocation2 + $0x9] sm:$0x7] %v483
  %639 = vst [vmem:[#allocation2 + $0xc] sm:$0x7] %v637
  %640 = vst [vmem:[#allocation3 + $0x26] sm:$0x38] %v483
  %641 = vst [vmem:[#allocation3 + $0x29] sm:$0x38] %v637
  %642 = vst [vmem:[#allocation2 + $0xf] sm:$0x1] 1.0
  %643 = vst [vmem:[#allocation3 + $0x2f] sm:$0x1] 1.0
  %v644 = vld [vmem:[#allocation2] sm:$0xff]
  %v645 = vld [vmem:[#allocation2 + $0x8] sm:$0xff]
  %v646 = vld [vmem:[%s1] sm:$0xf]
  %v647 = vld [vmem:[%s1 + $0x4] sm:$0xf]
  %v648 = vld [vmem:[%s1 + $0x8] sm:$0xf]
  %v649 = vld [vmem:[%s1 + $0xc] sm:$0xf]
  %v650 = vpack.c.bf16 %v645, %v644
  %v655 = vunpack.c.l.b16 %v646
  %v656 = vunpack.c.l.b16 %v647
  %v657 = vunpack.c.l.b16 %v648
  %v658 = vunpack.c.l.b16 %v649
  %v659 = vpack.c.b16 %v656, %v655
  %v660 = vpack.c.b16 %v658, %v657
  %vm661 = vcmask 130048
  %v663 = vsel %vm661, %v659, 0
  %v666 = vsel %vm661, %v660, 0
  %668 = vmatpush.bf16.msra.mxu0 0
  %669 = vmatpush.bf16.msra.mxu0 0
  %670 = vmatpush.bf16.msra.mxu0 0
  %671 = vmatpush.bf16.msra.mxu0 0
  %672 = vmatpush.bf16.msra.mxu0 0
  %673 = vmatpush.bf16.msra.mxu0 0
  %674 = vmatpush.bf16.msra.mxu0 0
  %675 = vmatpush.bf16.msra.mxu0 %v650
  %676 = vmatmul.bf16.gmra.mxu0 %v663
  %v677 = vpop.f32.mrf.mxu0
  %v678 = vadd.f32 0.0, %v677
  %v679 = vpop.f32.mrf.mxu0
  %v680 = vadd.f32 0.0, %v679
  %681 = vmatmul.bf16.gmra.mxu0 %v666
  %v682 = vpop.f32.mrf.mxu0
  %v683 = vadd.f32 0.0, %v682
  %v684 = vpop.f32.mrf.mxu0
  %v685 = vadd.f32 0.0, %v684
  %686 = vdwg.mxu0
  %vm687 = vcmp.ge.f32.partialorder %v678, 0.0
  %vm688 = vcmp.ge.f32.partialorder %v680, 0.0
  %vm689 = vcmp.ge.f32.partialorder %v683, 0.0
  %vm690 = vcmp.ge.f32.partialorder %v685, 0.0
  %v691 = vmul.f32 %v678, 0.2
  %v692 = vmul.f32 %v680, 0.2
  %v693 = vmul.f32 %v683, 0.2
  %v694 = vmul.f32 %v685, 0.2
  %v695 = vsel %vm687, %v678, %v691
  %v696 = vsel %vm688, %v680, %v692
  %v697 = vsel %vm689, %v683, %v693
  %v698 = vsel %vm690, %v685, %v694
  %v699 = vld [vmem:[%s1 + $0x10] sm:$0xf]
  %v700 = vld [vmem:[%s1 + $0x14] sm:$0xf]
  %v701 = vld [vmem:[%s1 + $0x18] sm:$0xf]
  %v702 = vld [vmem:[%s1 + $0x1c] sm:$0xf]
  %v703 = vpack.c.bf16 %v696, %v695
  %v704 = vpack.c.bf16 %v698, %v697
  %v705 = vunpack.c.l.bf16 %v699
  %v706 = vunpack.c.l.bf16 %v700
  %v707 = vunpack.c.l.bf16 %v701
  %v708 = vunpack.c.l.bf16 %v702
  %710 = vset.pattern.permute.xlu0 48
  %711 = vperm.xlu0 %710, %v705
  %v712 = vpop.permute.xlu0 %711
  %715 = vset.pattern.permute.xlu0 48
  %716 = vperm.xlu0 %715, %v706
  %v717 = vpop.permute.xlu0 %716
  %720 = vset.pattern.permute.xlu0 48
  %721 = vperm.xlu0 %720, %v707
  %v722 = vpop.permute.xlu0 %721
  %725 = vset.pattern.permute.xlu0 48
  %726 = vperm.xlu0 %725, %v708
  %v727 = vpop.permute.xlu0 %726
  %v733 = vunpack.c.l.b16 %v699
  %v734 = vunpack.c.l.b16 %v700
  %v735 = vunpack.c.l.b16 %v701
  %v736 = vunpack.c.l.b16 %v702
  %v737 = vpack.c.b16 %v734, %v733
  %v738 = vpack.c.b16 %v736, %v735
  %vm739 = vcmask 261120
  %v741 = vsel %vm739, %v737, 0
  %v744 = vsel %vm739, %v738, 0
  %746 = vmatpush.bf16.msra.mxu0 0
  %747 = vmatpush.bf16.msra.mxu0 0
  %748 = vmatpush.bf16.msra.mxu0 0
  %749 = vmatpush.bf16.msra.mxu0 0
  %750 = vmatpush.bf16.msra.mxu0 0
  %751 = vmatpush.bf16.msra.mxu0 0
  %752 = vmatpush.bf16.msra.mxu0 %v704
  %753 = vmatpush.bf16.msra.mxu0 %v703
  %754 = vmatmul.bf16.gmra.mxu0 %v741
  %v755 = vpop.f32.mrf.mxu0
  %v756 = vadd.f32 %v712, %v755
  %v757 = vpop.f32.mrf.mxu0
  %v758 = vadd.f32 %v717, %v757
  %759 = vmatmul.bf16.gmra.mxu0 %v744
  %v760 = vpop.f32.mrf.mxu0
  %v761 = vadd.f32 %v722, %v760
  %v762 = vpop.f32.mrf.mxu0
  %v763 = vadd.f32 %v727, %v762
  %764 = vdwg.mxu0
  %vm765 = vcmp.ge.f32.partialorder %v756, 0.0
  %vm766 = vcmp.ge.f32.partialorder %v758, 0.0
  %vm767 = vcmp.ge.f32.partialorder %v761, 0.0
  %vm768 = vcmp.ge.f32.partialorder %v763, 0.0
  %v769 = vmul.f32 %v756, 0.2
  %v770 = vmul.f32 %v758, 0.2
  %v771 = vmul.f32 %v761, 0.2
  %v772 = vmul.f32 %v763, 0.2
  %v773 = vsel %vm765, %v756, %v769
  %v774 = vsel %vm766, %v758, %v770
  %v775 = vsel %vm767, %v761, %v771
  %v776 = vsel %vm768, %v763, %v772
  %777 = vst [vmem:[#allocation3] sm:$0xff] %v773
  %778 = vst [vmem:[#allocation3 + $0x8] sm:$0xff] %v774
  %779 = vst [vmem:[#allocation3 + $0x10] sm:$0xff] %v775
  %780 = vst [vmem:[#allocation3 + $0x18] sm:$0xff] %v776
  %v781 = vld [vmem:[#allocation3] sm:$0xff]
  %v782 = vld [vmem:[#allocation3 + $0x8] sm:$0xff]
  %v783 = vld [vmem:[#allocation3 + $0x10] sm:$0xff]
  %v784 = vld [vmem:[#allocation3 + $0x18] sm:$0xff]
  %v785 = vld [vmem:[#allocation3 + $0x20] sm:$0xff]
  %v786 = vld [vmem:[#allocation3 + $0x28] sm:$0xff]
  %v787 = vld [vmem:[%s1 + $0x20] sm:$0xf]
  %v788 = vld [vmem:[%s1 + $0x24] sm:$0xf]
  %v789 = vld [vmem:[%s1 + $0x28] sm:$0xf]
  %v790 = vld [vmem:[%s1 + $0x2c] sm:$0xf]
  %v791 = vld [vmem:[%s1 + $0x30] sm:$0x3]
  %v792 = vpack.c.bf16 %v782, %v781
  %v793 = vpack.c.bf16 %v784, %v783
  %v794 = vpack.c.bf16 %v786, %v785
  %v800 = vunpack.c.l.b16 %v787
  %v801 = vunpack.c.l.b16 %v788
  %v802 = vunpack.c.l.b16 %v789
  %v803 = vunpack.c.l.b16 %v790
  %v804 = vunpack.c.l.b16 %v791
  %v805 = vpack.c.b16 %v801, %v800
  %v806 = vpack.c.b16 %v803, %v802
  %v807 = vpack.c.b16 %v804, %v804
  %vm808 = vcmask 392192
  %v810 = vsel %vm808, %v805, 0
  %v813 = vsel %vm808, %v806, 0
  %v816 = vsel %vm808, %v807, 0
  %818 = vmatpush.bf16.msra.mxu0 0
  %819 = vmatpush.bf16.msra.mxu0 0
  %820 = vmatpush.bf16.msra.mxu0 0
  %821 = vmatpush.bf16.msra.mxu0 0
  %822 = vmatpush.bf16.msra.mxu0 0
  %823 = vmatpush.bf16.msra.mxu0 %v794
  %824 = vmatpush.bf16.msra.mxu0 %v793
  %825 = vmatpush.bf16.msra.mxu0 %v792
  %826 = vmatmul.bf16.gmra.mxu0 %v810
  %v827 = vpop.f32.mrf.mxu0
  %v828 = vadd.f32 0.0, %v827
  %v829 = vpop.f32.mrf.mxu0
  %v830 = vadd.f32 0.0, %v829
  %831 = vmatmul.bf16.gmra.mxu0 %v813
  %v832 = vpop.f32.mrf.mxu0
  %v833 = vadd.f32 0.0, %v832
  %v834 = vpop.f32.mrf.mxu0
  %v835 = vadd.f32 0.0, %v834
  %836 = vmatmul.bf16.gmra.mxu0 %v816
  %v837 = vpop.f32.mrf.mxu0
  %v838 = vadd.f32 0.0, %v837
  %v839 = vpop.f32.mrf.mxu0
  %840 = vdwg.mxu0
  %v841 = vxor.u32 %v838, 2147483648
  %v842 = vmul.f32 %v841, 1.442695
  %v843 = vpow.pop %v842
  %v844 = vadd.f32 %v843, 1.0
  %v845 = vrcp.pop %v844
  %v846 = vmul.f32 %v844, %v845
  %v847 = vsub.f32 1.0, %v846
  %v848 = vmul.f32 %v845, %v847
  %v849 = vadd.f32 %v845, %v848
  %vm850 = vweird.f32 %v844
  %vm851 = vweird.f32 %v845
  %vm852 = vmor %vm850, %vm851
  %v853 = vsel %vm852, %v845, %v849
  %v854 = vand.u32 2147483647, %v844
  %vm855 = vcmp.eq.f32.partialorder %v854, 8.507059e+37
  %v856 = vand.u32 %v844, 2147483648
  %v857 = vor.u32 1.1754944e-38, %v856
  %v858 = vsel %vm855, %v857, %v853
  %v859 = vmul.f32 1.0, %v858
  %vm860 = vcmp.ge.f32.partialorder %v828, 0.0
  %vm861 = vcmp.ge.f32.partialorder %v830, 0.0
  %vm862 = vcmp.ge.f32.partialorder %v833, 0.0
  %vm863 = vcmp.ge.f32.partialorder %v835, 0.0
  %v864 = vmul.f32 %v828, 0.2
  %v865 = vmul.f32 %v830, 0.2
  %v866 = vmul.f32 %v833, 0.2
  %v867 = vmul.f32 %v835, 0.2
  %v868 = vsel %vm860, %v828, %v864
  %v869 = vsel %vm861, %v830, %v865
  %v870 = vsel %vm862, %v833, %v866
  %v871 = vsel %vm863, %v835, %v867
  %v872 = vld [vmem:[%s1 + $0x38] sm:$0xf]
  %v873 = vld [vmem:[%s1 + $0x3c] sm:$0xf]
  %v874 = vld [vmem:[%s1 + $0x40] sm:$0xf]
  %v875 = vld [vmem:[%s1 + $0x44] sm:$0xf]
  %v876 = vpack.c.bf16 %v869, %v868
  %v877 = vpack.c.bf16 %v871, %v870
  %v878 = vunpack.c.l.bf16 %v872
  %v879 = vunpack.c.l.bf16 %v873
  %v880 = vunpack.c.l.bf16 %v874
  %v881 = vunpack.c.l.bf16 %v875
  %883 = vset.pattern.permute.xlu0 48
  %884 = vperm.xlu0 %883, %v878
  %v885 = vpop.permute.xlu0 %884
  %888 = vset.pattern.permute.xlu0 48
  %889 = vperm.xlu0 %888, %v879
  %v890 = vpop.permute.xlu0 %889
  %893 = vset.pattern.permute.xlu0 48
  %894 = vperm.xlu0 %893, %v880
  %v895 = vpop.permute.xlu0 %894
  %898 = vset.pattern.permute.xlu0 48
  %899 = vperm.xlu0 %898, %v881
  %v900 = vpop.permute.xlu0 %899
  %v906 = vunpack.c.l.b16 %v872
  %v907 = vunpack.c.l.b16 %v873
  %v908 = vunpack.c.l.b16 %v874
  %v909 = vunpack.c.l.b16 %v875
  %v910 = vpack.c.b16 %v907, %v906
  %v911 = vpack.c.b16 %v909, %v908
  %v913 = vsel %vm739, %v910, 0
  %v916 = vsel %vm739, %v911, 0
  %918 = vmatpush.bf16.msra.mxu0 0
  %919 = vmatpush.bf16.msra.mxu0 0
  %920 = vmatpush.bf16.msra.mxu0 0
  %921 = vmatpush.bf16.msra.mxu0 0
  %922 = vmatpush.bf16.msra.mxu0 0
  %923 = vmatpush.bf16.msra.mxu0 0
  %924 = vmatpush.bf16.msra.mxu0 %v877
  %925 = vmatpush.bf16.msra.mxu0 %v876
  %926 = vmatmul.bf16.gmra.mxu0 %v913
  %v927 = vpop.f32.mrf.mxu0
  %v928 = vadd.f32 %v885, %v927
  %v929 = vpop.f32.mrf.mxu0
  %v930 = vadd.f32 %v890, %v929
  %931 = vmatmul.bf16.gmra.mxu0 %v916
  %v932 = vpop.f32.mrf.mxu0
  %v933 = vadd.f32 %v895, %v932
  %v934 = vpop.f32.mrf.mxu0
  %v935 = vadd.f32 %v900, %v934
  %936 = vdwg.mxu0
  %vm937 = vcmp.ge.f32.partialorder %v928, 0.0
  %vm938 = vcmp.ge.f32.partialorder %v930, 0.0
  %vm939 = vcmp.ge.f32.partialorder %v933, 0.0
  %vm940 = vcmp.ge.f32.partialorder %v935, 0.0
  %v941 = vmul.f32 %v928, 0.2
  %v942 = vmul.f32 %v930, 0.2
  %v943 = vmul.f32 %v933, 0.2
  %v944 = vmul.f32 %v935, 0.2
  %v945 = vsel %vm937, %v928, %v941
  %v946 = vsel %vm938, %v930, %v942
  %v947 = vsel %vm939, %v933, %v943
  %v948 = vsel %vm940, %v935, %v944
  %v949 = vld [vmem:[%s1 + $0x48] sm:$0x3]
  %v950 = vpack.c.bf16 %v946, %v945
  %v951 = vpack.c.bf16 %v948, %v947
  %v952 = vunpack.c.l.bf16 %v949
  %954 = vset.pattern.permute.xlu0 48
  %955 = vperm.xlu0 %954, %v952
  %v956 = vpop.permute.xlu0 %955
  %v959 = vsel %vm739, %v949, 0
  %961 = vmatpush.bf16.msra.mxu0 0
  %962 = vmatpush.bf16.msra.mxu0 0
  %963 = vmatpush.bf16.msra.mxu0 0
  %964 = vmatpush.bf16.msra.mxu0 0
  %965 = vmatpush.bf16.msra.mxu0 0
  %966 = vmatpush.bf16.msra.mxu0 0
  %967 = vmatpush.bf16.msra.mxu0 %v951
  %968 = vmatpush.bf16.msra.mxu0 %v950
  %969 = vmatmul.bf16.gmra.mxu0 %v959
  %v970 = vpop.f32.mrf.mxu0
  %v971 = vadd.f32 %v956, %v970
  %v972 = vpop.f32.mrf.mxu0
  %973 = vdwg.mxu0
  %v974 = vxor.u32 %v971, 2147483648
  %v975 = vmul.f32 %v974, 1.442695
  %v976 = vpow.pop %v975
  %v977 = vadd.f32 %v976, 1.0
  %v978 = vrcp.pop %v977
  %v979 = vmul.f32 %v977, %v978
  %v980 = vsub.f32 1.0, %v979
  %v981 = vmul.f32 %v978, %v980
  %v982 = vadd.f32 %v978, %v981
  %vm983 = vweird.f32 %v977
  %vm984 = vweird.f32 %v978
  %vm985 = vmor %vm983, %vm984
  %v986 = vsel %vm985, %v978, %v982
  %v987 = vand.u32 2147483647, %v977
  %vm988 = vcmp.eq.f32.partialorder %v987, 8.507059e+37
  %v989 = vand.u32 %v977, 2147483648
  %v990 = vor.u32 1.1754944e-38, %v989
  %v991 = vsel %vm988, %v990, %v986
  %v992 = vmul.f32 1.0, %v991
  %v993 = vadd.f32 %v859, %v992
  %v994 = vmax.f32 %v993, 0.0
  %995 = vst [vmem:[%s2] sm:$0x7] %v994
  // Predicated region
  $region10: #{apply.1} parent=0 // pred_check
    _
  $region11: #{apply.1} parent=0 // pred_check_branch
    %997 = sbr.rel (0) target = $region13
  $region12: #{apply.1} parent=0 // pred_region
    _
  $region13: #{apply.1} parent=0 // pred_fallthru
    _
  // Predicated region
  $region14: #{apply.1} parent=0 // pred_check
    _
  $region15: #{apply.1} parent=0 // pred_check_branch
    %999 = sbr.rel (0) target = $region17
  $region16: #{apply.1} parent=0 // pred_region
    _
  $region17: #{apply.1} parent=0 // pred_fallthru
    _

</llo_original>
